<compile_context>
chip_gen: v7x
topology: tpu7x:2x2x1
jax: 0.10.0
libtpu: 0.0.40
codegen_flags: <defaults>
</compile_context>

<pallas_src>
import math

import jax
import jax.numpy as jnp
from jax.experimental import pallas as pl
from jax.experimental.pallas import tpu as pltpu


def _qkv_proj_kernel(dot_dtype):
    def kernel(x_ref, w_ref, b_ref, o_ref):
        x = x_ref[0].astype(dot_dtype)                       # (tq, C)
        w = w_ref[...].astype(dot_dtype)                     # (C, 3C), pre-transposed
        y = jnp.dot(x, w, preferred_element_type=jnp.float32) + b_ref[...]
        o_ref[0] = y.astype(o_ref.dtype)

    return kernel


def _flash_attn_kernel(n_head, head_dim, n_embd, blk, dot_dtype):
    scale = 1.0 / math.sqrt(head_dim)

    def kernel(q_ref, k_ref, v_ref, wp_ref, bp_ref, o_ref, m_sc, l_sc, acc_sc):
        qi = pl.program_id(1)
        ki = pl.program_id(2)

        @pl.when(ki == 0)
        def _init():
            m_sc[...] = jnp.full(m_sc.shape, -jnp.inf, jnp.float32)
            l_sc[...] = jnp.zeros(l_sc.shape, jnp.float32)
            acc_sc[...] = jnp.zeros(acc_sc.shape, jnp.float32)

        # Skip kv tiles that lie entirely above the causal diagonal (halves MXU/EUP work).
        @pl.when(ki <= qi)
        def _compute():
            # Fold the 1/sqrt(hd) scale into q (tq*hd elems) instead of the scores (tq*tk).
            q = (q_ref[0] * scale).astype(dot_dtype)          # (H, tq, hd)
            k = k_ref[0].astype(dot_dtype)                    # (H, tk, hd)
            v = v_ref[0].astype(dot_dtype)                    # (H, tk, hd)

            s = jnp.einsum("hqd,hkd->hqk", q, k,
                           preferred_element_type=jnp.float32)  # (H, tq, tk) f32

            # Causal mask via global positions; only the diagonal tile actually masks.
            row = qi * blk + jax.lax.broadcasted_iota(jnp.int32, (blk, blk), 0)
            col = ki * blk + jax.lax.broadcasted_iota(jnp.int32, (blk, blk), 1)
            s = jnp.where((row >= col)[None, :, :], s, -jnp.inf)

            m_prev = m_sc[...]                                # (H, tq, 1)
            m_new = jnp.maximum(m_prev, jnp.max(s, axis=-1, keepdims=True))
            alpha = jnp.exp(m_prev - m_new)
            p = jnp.exp(s - m_new)                            # (H, tq, tk)

            l_sc[...] = alpha * l_sc[...] + jnp.sum(p, axis=-1, keepdims=True)
            acc_sc[...] = alpha * acc_sc[...] + jnp.einsum(
                "hqk,hkd->hqd", p.astype(dot_dtype), v,
                preferred_element_type=jnp.float32)
            m_sc[...] = m_new

        @pl.when(ki == pl.num_programs(2) - 1)
        def _finalize():
            # Normalize the small accumulator (not the (tq,tk) probabilities) with an
            # approximate EUP reciprocal, then fold the output projection per head into
            # a lane-dense (tq, C) accumulation.
            inv_l = pl.reciprocal(l_sc[...], approx=True)     # (H, tq, 1)
            y = (acc_sc[...] * inv_l).astype(dot_dtype)       # (H, tq, hd)
            out = jnp.zeros((blk, n_embd), jnp.float32)
            for h in range(n_head):
                out = out + jnp.dot(y[h], wp_ref[h].astype(dot_dtype),
                                    preferred_element_type=jnp.float32)
            out = out + bp_ref[...]                           # (1, C) broadcast
            o_ref[0] = out.astype(o_ref.dtype)

    return kernel


def mem_causal_self_attention(x, params, n_head, *, blk=None, dot_dtype=jnp.float32):
    """x: (B, T, C). params: torch nn.Linear layout weights (out, in) and biases (out,)."""
    B, T, C = x.shape
    assert C % n_head == 0
    hd = C // n_head
    if blk is None:
        blk = min(T, 128)
    assert T % blk == 0 and (blk % 8 == 0 or blk == T)
    n_tiles = T // blk

    # Host-side weight prep: fuse QKV and pre-transpose everything (torch y = x @ W.T + b).
    w_qkv = jnp.concatenate(
        [params["wq"].T, params["wk"].T, params["wv"].T], axis=1)        # (C, 3C)
    b_qkv = jnp.concatenate(
        [params["bq"], params["bk"], params["bv"]]).reshape(1, 3 * C)    # (1, 3C)
    wp_r = params["wp"].T.reshape(n_head, hd, C)                         # (H, hd, C)
    bp = params["bp"].reshape(1, C)

    # ---- Kernel 1: fused QKV projection ----
    qkv = pl.pallas_call(
        _qkv_proj_kernel(dot_dtype),
        out_shape=jax.ShapeDtypeStruct((B, T, 3 * C), x.dtype),
        grid_spec=pltpu.PrefetchScalarGridSpec(
            num_scalar_prefetch=0,
            grid=(B, n_tiles),
            in_specs=[
                pl.BlockSpec((1, blk, C), lambda b, i: (b, i, 0)),
                pl.BlockSpec((C, 3 * C), lambda b, i: (0, 0)),
                pl.BlockSpec((1, 3 * C), lambda b, i: (0, 0)),
            ],
            out_specs=pl.BlockSpec((1, blk, 3 * C), lambda b, i: (b, i, 0)),
        ),
        compiler_params=pltpu.CompilerParams(
            dimension_semantics=("parallel", "parallel")),
    )(x, w_qkv, b_qkv)

    # XLA glue: split and transpose to head-major (B, H, T, hd) so the attention kernel
    # gets leading-batch-dim matmuls with no in-kernel relayouts.
    qkv5 = qkv.reshape(B, T, 3, n_head, hd)
    q = jnp.transpose(qkv5[:, :, 0], (0, 2, 1, 3))
    k = jnp.transpose(qkv5[:, :, 1], (0, 2, 1, 3))
    v = jnp.transpose(qkv5[:, :, 2], (0, 2, 1, 3))

    # ---- Kernel 2: flash attention + fused output projection ----
    out = pl.pallas_call(
        _flash_attn_kernel(n_head, hd, C, blk, dot_dtype),
        out_shape=jax.ShapeDtypeStruct((B, T, C), x.dtype),
        grid_spec=pltpu.PrefetchScalarGridSpec(
            num_scalar_prefetch=0,
            grid=(B, n_tiles, n_tiles),
            in_specs=[
                pl.BlockSpec((1, n_head, blk, hd), lambda b, qi, ki: (b, 0, qi, 0)),  # q
                pl.BlockSpec((1, n_head, blk, hd), lambda b, qi, ki: (b, 0, ki, 0)),  # k
                pl.BlockSpec((1, n_head, blk, hd), lambda b, qi, ki: (b, 0, ki, 0)),  # v
                pl.BlockSpec((n_head, hd, C), lambda b, qi, ki: (0, 0, 0)),           # Wp
                pl.BlockSpec((1, C), lambda b, qi, ki: (0, 0)),                       # bp
            ],
            out_specs=pl.BlockSpec((1, blk, C), lambda b, qi, ki: (b, qi, 0)),
            scratch_shapes=[
                pltpu.VMEM((n_head, blk, 1), jnp.float32),    # m (running max)
                pltpu.VMEM((n_head, blk, 1), jnp.float32),    # l (running denom)
                pltpu.VMEM((n_head, blk, hd), jnp.float32),   # acc (running numerator)
            ],
        ),
        compiler_params=pltpu.CompilerParams(
            dimension_semantics=("parallel", "parallel", "arbitrary")),
    )(q, k, v, wp_r, bp)

    return out


def reference(x, params, n_head):
    """Pure-JAX reference mirroring the PyTorch forward (eval mode)."""
    B, T, C = x.shape
    hd = C // n_head
    q = x @ params["wq"].T + params["bq"]
    k = x @ params["wk"].T + params["bk"]
    v = x @ params["wv"].T + params["bv"]
    q = q.reshape(B, T, n_head, hd).transpose(0, 2, 1, 3)
    k = k.reshape(B, T, n_head, hd).transpose(0, 2, 1, 3)
    v = v.reshape(B, T, n_head, hd).transpose(0, 2, 1, 3)
    att = (q @ jnp.swapaxes(k, -2, -1)) * (1.0 / math.sqrt(hd))
    mask = jnp.tril(jnp.ones((T, T), dtype=bool))
    att = jnp.where(mask[None, None], att, -jnp.inf)
    att = jax.nn.softmax(att, axis=-1)
    y = att @ v
    y = y.transpose(0, 2, 1, 3).reshape(B, T, C)
    return y @ params["wp"].T + params["bp"]


if __name__ == "__main__":
    # Small config: B=2, T=256 (two 128-wide q/kv tiles to exercise the online softmax
    # and the causal tile skip), C=128, n_head=4 (head_dim=32).
    B, T, C, n_head = 2, 256, 128, 4

    key = jax.random.PRNGKey(0)
    ks = jax.random.split(key, 9)
    params = {
        "wq": 0.02 * jax.random.normal(ks[0], (C, C), jnp.float32),
        "bq": 0.01 * jax.random.normal(ks[1], (C,), jnp.float32),
        "wk": 0.02 * jax.random.normal(ks[2], (C, C), jnp.float32),
        "bk": 0.01 * jax.random.normal(ks[3], (C,), jnp.float32),
        "wv": 0.02 * jax.random.normal(ks[4], (C, C), jnp.float32),
        "bv": 0.01 * jax.random.normal(ks[5], (C,), jnp.float32),
        "wp": 0.02 * jax.random.normal(ks[6], (C, C), jnp.float32),
        "bp": 0.01 * jax.random.normal(ks[7], (C,), jnp.float32),
    }
    x = jax.random.normal(ks[8], (B, T, C), jnp.float32)

    out = mem_causal_self_attention(x, params, n_head)
    out = jax.block_until_ready(out)

    ref = reference(x, params, n_head)
    assert out.shape == (B, T, C)
    assert jnp.allclose(out, ref, atol=2e-3, rtol=2e-3), (
        f"max abs diff {jnp.max(jnp.abs(out - ref))}")

    print("KERNEL_OK")
</pallas_src>

<mosaic_0001>
module attributes {stable_mosaic.version = 11 : i64} {
  func.func @kernel(%arg0: i32, %arg1: i32, %arg2: memref<1x128x128xf32, #tpu.memory_space<vmem>>, %arg3: memref<128x384xf32, #tpu.memory_space<vmem>>, %arg4: memref<1x384xf32, #tpu.memory_space<vmem>>, %arg5: memref<1x128x384xf32, #tpu.memory_space<vmem>>) attributes {dimension_semantics = [#tpu.dimension_semantics<parallel>, #tpu.dimension_semantics<parallel>], iteration_bounds = array<i64: 2, 2>, scalar_prefetch = 0 : i64, scratch_operands = 0 : i64, tpu.core_type = #tpu.core_type<tc>, window_params = [{transform_indices = @transform_0, window_bounds = array<i64: 1, 128, 128>}, {pipeline_mode = #tpu.pipeline_mode<synchronous>, transform_indices = @transform_1, window_bounds = array<i64: 128, 384>}, {pipeline_mode = #tpu.pipeline_mode<synchronous>, transform_indices = @transform_2, window_bounds = array<i64: 1, 384>}, {transform_indices = @transform_3, window_bounds = array<i64: 1, 128, 384>}]} {
    %c0 = arith.constant 0 : index
    %c0_0 = arith.constant 0 : index
    %c0_1 = arith.constant 0 : index
    %0 = vector.load %arg2[%c0, %c0_0, %c0_1] : memref<1x128x128xf32, #tpu.memory_space<vmem>>, vector<1x128x128xf32>
    %1 = vector.shape_cast %0 : vector<1x128x128xf32> to vector<128x128xf32>
    %c0_2 = arith.constant 0 : index
    %c0_3 = arith.constant 0 : index
    %2 = vector.load %arg3[%c0_2, %c0_3] : memref<128x384xf32, #tpu.memory_space<vmem>>, vector<128x384xf32>
    %cst = arith.constant dense<0.000000e+00> : vector<128x384xf32>
    %3 = tpu.matmul %1, %2, %cst {dimension_numbers = #tpu.dot_dimension_numbers<[1], [0], [0], [1], [0, 0, 1, 1], [], []>} : vector<128x128xf32>, vector<128x384xf32>, vector<128x384xf32> -> vector<128x384xf32>
    %c0_4 = arith.constant 0 : index
    %c0_5 = arith.constant 0 : index
    %4 = vector.load %arg4[%c0_4, %c0_5] : memref<1x384xf32, #tpu.memory_space<vmem>>, vector<1x384xf32>
    %5 = vector.broadcast %4 : vector<1x384xf32> to vector<128x384xf32>
    %6 = arith.addf %3, %5 : vector<128x384xf32>
    %c0_6 = arith.constant 0 : index
    %c0_7 = arith.constant 0 : index
    %c0_8 = arith.constant 0 : index
    %7 = vector.load %arg5[%c0_6, %c0_7, %c0_8] : memref<1x128x384xf32, #tpu.memory_space<vmem>>, vector<1x128x384xf32>
    %8 = vector.shape_cast %7 : vector<1x128x384xf32> to vector<128x384xf32>
    %9 = vector.shape_cast %6 : vector<128x384xf32> to vector<1x128x384xf32>
    tpu.vector_store %arg5[%c0_6, %c0_7, %c0_8], %9 {strides = array<i32>} : memref<1x128x384xf32, #tpu.memory_space<vmem>>, vector<1x128x384xf32>,
    return
  }
  func.func @transform_0(%arg0: i32, %arg1: i32) -> (i32, i32, i32) {
    %c0_i32 = arith.constant 0 : i32
    %c0_i32_0 = arith.constant 0 : i32
    return %arg0, %arg1, %c0_i32 : i32, i32, i32
  }
  func.func @transform_1(%arg0: i32, %arg1: i32) -> (i32, i32) {
    %c0_i32 = arith.constant 0 : i32
    %c0_i32_0 = arith.constant 0 : i32
    %c0_i32_1 = arith.constant 0 : i32
    return %c0_i32, %c0_i32_0 : i32, i32
  }
  func.func @transform_2(%arg0: i32, %arg1: i32) -> (i32, i32) {
    %c0_i32 = arith.constant 0 : i32
    %c0_i32_0 = arith.constant 0 : i32
    %c0_i32_1 = arith.constant 0 : i32
    return %c0_i32, %c0_i32_0 : i32, i32
  }
  func.func @transform_3(%arg0: i32, %arg1: i32) -> (i32, i32, i32) {
    %c0_i32 = arith.constant 0 : i32
    %c0_i32_0 = arith.constant 0 : i32
    return %arg0, %arg1, %c0_i32 : i32, i32, i32
  }
}

</mosaic_0001>

<llo_original>
// kernel: tpu_custom_call.1
$region0: #{tpu_custom_call.1}
  #allocation0 [shape = 'u32[]', space=smem, size = 0x4, offset = 0x4, fixed_abs, tag = 'smem constant byte address 0x4 - core index']
  #allocation1 [shape = 'u32[144,128]{1,0:T(1,128)}', space=vmem, size = 0x12000, scoped, tag = 'internal scratch']
  %s0 = inlined_call_operand.hbm [shape: f32[2,256,128], index: 0, kind: input, shape index: {}]
  %s1 = inlined_call_operand.hbm [shape: f32[128,384], index: 1, kind: input, shape index: {}]
  %s2 = inlined_call_operand.vmem [shape: f32[1,384], index: 2, kind: input, shape index: {}]
  %s3 = inlined_call_operand.hbm [shape: f32[2,256,384], index: 3, kind: output, shape index: {}]
  %s4 = sld [smem:[#allocation0]]
  $region53: #{tpu_custom_call.1} parent=0
    _
  %s6 = ssub.s32 1, %s4
  %s7 = scalar_select 0, %s6, %s4
  $region1: #{tpu_custom_call.1} parent=0
    #allocation2 [shape = 'u8[131072]{0}', space=vmem, size = 0x20000, scoped, tag = 'input window, operand 0']
    #allocation3 [shape = 's32[2]{0}', space=sflag, size = 0x8, scoped, tag = 'scoped memory for tpu_custom_call.1']
    #allocation4 [shape = 's32[2]{0}', space=sflag, size = 0x8, scoped, tag = 'scoped memory for tpu_custom_call.1']
    #allocation5 [shape = 'u8[196608]{0}', space=vmem, size = 0x30000, scoped, tag = 'input window, operand 1, single buffered']
    #allocation6 [shape = 's32[1]{0}', space=sflag, size = 0x4, scoped, tag = 'scoped memory for tpu_custom_call.1']
    #allocation7 [shape = 'u8[393216]{0}', space=vmem, size = 0x60000, scoped, tag = 'output window, operand 0']
    %8 = vsyncpa [#allocation3], 0
    %s9 = scalar_lea.sflag [#allocation3], 1
    %10 = vsyncpa %s9, 0
    %11 = vsyncpa [#allocation6], 0
    %12 = vsyncpa [#allocation4], 0
    %s13 = scalar_lea.sflag [#allocation4], 1
    %14 = vsyncpa %s13, 0
    loop: start=0, step=1, limit=6
    $region2: #{tpu_custom_call.1} parent=1 // loop_pre_header
      _
    $region3: #{tpu_custom_call.1} parent=1 // loop_header
      %s16 = sphi 0, %s20
      %p17 = scmp.ge.s32.totalorder %s16, 6
      %s23 = sphi 0, %s35
      %s24 = sphi 0, %s31
      %s25 = sphi 0, %s23
      %s26 = sphi 0, %s24
      %s27 = sphi 0, %s25
      %s28 = sphi 0, %s26
      %s40 = sphi 0, %s42
      %s43 = sphi 0, %s40
      %s44 = sphi 0, %s43
      %s60 = sphi 0, %s44
      %s64 = sphi 0, %s64
      %s66 = sphi 0, %s64
      %s67 = sphi 0, %s66
      %s81 = sphi 0, %s67
      %s85 = sphi 0, %s85
      %s87 = sphi 0, %s85
      %s88 = sphi 0, %s87
      %s102 = sphi 0, %s88
      %s110 = sphi 0, %s112
      %s113 = sphi 0, %s110
      %s114 = sphi 0, %s113
      %s130 = sphi 0, %s114
    $region4: #{tpu_custom_call.1} parent=1 // loop_header_branch
      %19 = sbr.rel (%p17) target = $region8
    $region5: #{tpu_custom_call.1} parent=1 // loop_body
      %s21 = ssub.s32 %s16, 1
      %s22 = ssub.s32 %s16, 2
      %s29 = sadd.s32 1, %s24
      %p30 = scmp.ge.s32.totalorder %s29, 2
      %s31 = scalar_select %p30, 0, %s29
      %s32 = sadd.s32 1, %s23
      %s33 = scalar_select %p30, %s32, %s23
      %p34 = scmp.ge.s32.totalorder %s33, 2
      %s35 = scalar_select %p34, 0, %s33
      %s36 = ssub.s32 %s23, %s35
      %s37 = ssub.s32 %s24, %s31
      %s38 = sor.u32 %s36, %s37
      %p39 = scmp.eq.s32.totalorder %s38, 0
      %s41 = sadd.s32 %s40, 1
      %s42 = scalar_select %p39, %s40, %s41
      %p45 = pneg %p39
      %p46 = scmp.eq.s32.totalorder %s16, 3
      %p47 = por %p45, %p46
      %p48 = scmp.ne.s32.totalorder %s40, %s43
      %p49 = scmp.eq.s32.totalorder %s16, 0
      %p50 = por %p48, %p49
      %p51 = scmp.ne.s32.totalorder %s40, %s43
      %p52 = scmp.eq.s32.totalorder %s21, 3
      %p53 = por %p51, %p52
      %p54 = scmp.ne.s32.totalorder %s43, %s44
      %p55 = scmp.eq.s32.totalorder %s21, 0
      %p56 = por %p54, %p55
      %p57 = scmp.ne.s32.totalorder %s43, %s44
      %p58 = scmp.eq.s32.totalorder %s22, 3
      %p59 = por %p57, %p58
      %p61 = scmp.ne.s32.totalorder %s44, %s60
      %p62 = scmp.eq.s32.totalorder %s22, 0
      %p63 = por %p61, %p62
      %s65 = sadd.s32 %s64, 1
      %p68 = scmp.eq.s32.totalorder %s16, 3
      %p69 = scmp.ne.s32.totalorder %s64, %s66
      %p70 = scmp.eq.s32.totalorder %s16, 0
      %p71 = por %p69, %p70
      %p72 = scmp.ne.s32.totalorder %s64, %s66
      %p73 = scmp.eq.s32.totalorder %s21, 3
      %p74 = por %p72, %p73
      %p75 = scmp.ne.s32.totalorder %s66, %s67
      %p76 = scmp.eq.s32.totalorder %s21, 0
      %p77 = por %p75, %p76
      %p78 = scmp.ne.s32.totalorder %s66, %s67
      %p79 = scmp.eq.s32.totalorder %s22, 3
      %p80 = por %p78, %p79
      %p82 = scmp.ne.s32.totalorder %s67, %s81
      %p83 = scmp.eq.s32.totalorder %s22, 0
      %p84 = por %p82, %p83
      %s86 = sadd.s32 %s85, 1
      %p89 = scmp.eq.s32.totalorder %s16, 3
      %p90 = scmp.ne.s32.totalorder %s85, %s87
      %p91 = scmp.eq.s32.totalorder %s16, 0
      %p92 = por %p90, %p91
      %p93 = scmp.ne.s32.totalorder %s85, %s87
      %p94 = scmp.eq.s32.totalorder %s21, 3
      %p95 = por %p93, %p94
      %p96 = scmp.ne.s32.totalorder %s87, %s88
      %p97 = scmp.eq.s32.totalorder %s21, 0
      %p98 = por %p96, %p97
      %p99 = scmp.ne.s32.totalorder %s87, %s88
      %p100 = scmp.eq.s32.totalorder %s22, 3
      %p101 = por %p99, %p100
      %p103 = scmp.ne.s32.totalorder %s88, %s102
      %p104 = scmp.eq.s32.totalorder %s22, 0
      %p105 = por %p103, %p104
      %s106 = ssub.s32 %s23, %s35
      %s107 = ssub.s32 %s24, %s31
      %s108 = sor.u32 %s106, %s107
      %p109 = scmp.eq.s32.totalorder %s108, 0
      %s111 = sadd.s32 %s110, 1
      %s112 = scalar_select %p109, %s110, %s111
      %p115 = pneg %p109
      %p116 = scmp.eq.s32.totalorder %s16, 3
      %p117 = por %p115, %p116
      %p118 = scmp.ne.s32.totalorder %s110, %s113
      %p119 = scmp.eq.s32.totalorder %s16, 0
      %p120 = por %p118, %p119
      %p121 = scmp.ne.s32.totalorder %s110, %s113
      %p122 = scmp.eq.s32.totalorder %s21, 3
      %p123 = por %p121, %p122
      %p124 = scmp.ne.s32.totalorder %s113, %s114
      %p125 = scmp.eq.s32.totalorder %s21, 0
      %p126 = por %p124, %p125
      %p127 = scmp.ne.s32.totalorder %s113, %s114
      %p128 = scmp.eq.s32.totalorder %s22, 3
      %p129 = por %p127, %p128
      %p131 = scmp.ne.s32.totalorder %s114, %s130
      %p132 = scmp.eq.s32.totalorder %s22, 0
      %p133 = por %p131, %p132
      %p134 = scmp.le.s32.totalorder 1, %s16
      %p135 = scmp.lt.s32.totalorder %s16, 5
      %p136 = pnand %p134, %p135
      %p137 = pneg %p136
      // Predicated region
      $region9: #{tpu_custom_call.1} parent=5 // pred_check
        _
      $region10: #{tpu_custom_call.1} parent=5 // pred_check_branch
        %139 = sbr.rel (%p136) target = $region12
      $region11: #{tpu_custom_call.1} parent=5 // pred_region
        %s140 = ssub.s32 %s16, 1
        // Predicated region
        $region13: #{tpu_custom_call.1} parent=11 // pred_check
          %p141 = pneg %p77
        $region14: #{tpu_custom_call.1} parent=11 // pred_check_branch
          %143 = sbr.rel (%p141) target = $region16
        $region15: #{tpu_custom_call.1} parent=11 // pred_region
          %s145 = ssub.s32 6144, 6144
          %146 = vsyncadd [#allocation6], %s145
          %s147 = sshll.u32 [#allocation5], 4
          %s148 = int_to_ptr.vmem [resolvable:$true] %s147
          %153 = dma.hbm_to_vmem [thread:$0]  %s1, 6144, %s148, [#allocation6], 384, 384, 24
        $region16: #{tpu_custom_call.1} parent=11 // pred_fallthru
          _
        // Predicated region
        $region17: #{tpu_custom_call.1} parent=11 // pred_check
          %p154 = pneg %p98
        $region18: #{tpu_custom_call.1} parent=11 // pred_check_branch
          %156 = sbr.rel (%p154) target = $region20
        $region19: #{tpu_custom_call.1} parent=11 // pred_region
          _
        $region20: #{tpu_custom_call.1} parent=11 // pred_fallthru
          _
      $region12: #{tpu_custom_call.1} parent=5 // pred_fallthru
        _
      %p157 = scmp.lt.s32.totalorder %s16, 4
      // Predicated region
      $region21: #{tpu_custom_call.1} parent=5 // pred_check
        %p158 = pneg %p157
      $region22: #{tpu_custom_call.1} parent=5 // pred_check_branch
        %160 = sbr.rel (%p158) target = $region24
      $region23: #{tpu_custom_call.1} parent=5 // pred_region
        // Predicated region
        $region25: #{tpu_custom_call.1} parent=23 // pred_check
          %p161 = pneg %p50
        $region26: #{tpu_custom_call.1} parent=23 // pred_check_branch
          %163 = sbr.rel (%p161) target = $region28
        $region27: #{tpu_custom_call.1} parent=23 // pred_region
          %s164 = sand.u32 %s40, 1
          %s165 = scalar_lea.sflag [#allocation3], %s164
          %s166 = sand.u32 %s40, 1
          %s167 = smul.addr %s166, 128
          %s168 = scalar_lea.vmem [#allocation2], %s167
          %s169 = smul.u32 16, %s24
          %s171 = ssub.s32 2048, 2048
          %172 = vsyncadd %s165, %s171
          %s173 = smul.addr %s23, 32
          %s174 = sadd.s32 %s169, %s173
          %s175 = smul.addr %s174, 128
          %s176 = scalar_lea.hbm %s0, %s175
          %s177 = sshll.u32 %s168, 4
          %s178 = int_to_ptr.vmem [resolvable:$true] %s177
          %183 = dma.hbm_to_vmem [thread:$0]  %s176, 2048, %s178, %s165, 128, 128, 8
        $region28: #{tpu_custom_call.1} parent=23 // pred_fallthru
          _
      $region24: #{tpu_custom_call.1} parent=5 // pred_fallthru
        _
      %p184 = scmp.le.s32.totalorder 1, %s16
      %p185 = scmp.lt.s32.totalorder %s16, 5
      %p186 = pnand %p184, %p185
      %p187 = pneg %p186
      // Predicated region
      $region29: #{tpu_custom_call.1} parent=5 // pred_check
        _
      $region30: #{tpu_custom_call.1} parent=5 // pred_check_branch
        %189 = sbr.rel (%p186) target = $region32
      $region31: #{tpu_custom_call.1} parent=5 // pred_region
        %s190 = ssub.s32 %s16, 1
        %s191 = sand.u32 %s43, 1
        %s192 = scalar_lea.sflag [#allocation3], %s191
        %s193 = sand.u32 %s43, 1
        %s194 = smul.addr %s193, 128
        %s195 = scalar_lea.vmem [#allocation2], %s194
        // Predicated region
        $region33: #{tpu_custom_call.1} parent=31 // pred_check
          %p196 = pneg %p56
        $region34: #{tpu_custom_call.1} parent=31 // pred_check_branch
          %198 = sbr.rel (%p196) target = $region36
        $region35: #{tpu_custom_call.1} parent=31 // pred_region
          %199 = dma.done %s192, 2048
        $region36: #{tpu_custom_call.1} parent=31 // pred_fallthru
          _
        // Predicated region
        $region37: #{tpu_custom_call.1} parent=31 // pred_check
          %p200 = pneg %p77
        $region38: #{tpu_custom_call.1} parent=31 // pred_check_branch
          %202 = sbr.rel (%p200) target = $region40
        $region39: #{tpu_custom_call.1} parent=31 // pred_region
          %203 = dma.done [#allocation6], 6144
        $region40: #{tpu_custom_call.1} parent=31 // pred_fallthru
          _
        %s204 = sand.u32 %s43, 1
        %s205 = scalar_lea.sflag [#allocation3], %s204
        %s206 = sand.u32 %s43, 1
        %s207 = smul.addr %s206, 128
        %s208 = scalar_lea.vmem [#allocation2], %s207
        %p209 = pneg %p56
        %p210 = pneg %p53
        %p211 = pneg %p77
        %p212 = pneg %p74
        %p213 = pneg %p98
        %p214 = pneg %p95
        %p215 = pneg %p126
        %p216 = pneg %p123
        %s217 = sand.u32 %s113, 1
        %s218 = scalar_lea.sflag [#allocation4], %s217
        %s219 = sand.u32 %s113, 1
        %s220 = smul.addr %s219, 384
        %s221 = scalar_lea.vmem [#allocation7], %s220
        %s222 = smul.u32 16, %s26
        %s223 = smul.u32 16, %s26
        %v224 = vld [vmem:[%s195] sm:$0xff]
        %v225 = vld [vmem:[%s195 + $0x8] sm:$0xff]
        %v226 = vld [vmem:[%s195 + $0x10] sm:$0xff]
        %v227 = vld [vmem:[%s195 + $0x18] sm:$0xff]
        %v228 = vld [vmem:[%s195 + $0x20] sm:$0xff]
        %v229 = vld [vmem:[%s195 + $0x28] sm:$0xff]
        %v230 = vld [vmem:[%s195 + $0x30] sm:$0xff]
        %v231 = vld [vmem:[%s195 + $0x38] sm:$0xff]
        %v232 = vld [vmem:[%s195 + $0x40] sm:$0xff]
        %v233 = vld [vmem:[%s195 + $0x48] sm:$0xff]
        %v234 = vld [vmem:[%s195 + $0x50] sm:$0xff]
        %v235 = vld [vmem:[%s195 + $0x58] sm:$0xff]
        %v236 = vld [vmem:[%s195 + $0x60] sm:$0xff]
        %v237 = vld [vmem:[%s195 + $0x68] sm:$0xff]
        %v238 = vld [vmem:[%s195 + $0x70] sm:$0xff]
        %v239 = vld [vmem:[%s195 + $0x78] sm:$0xff]
        %v240 = vld [vmem:[#allocation5] sm:$0xff]
        %v241 = vld [vmem:[#allocation5 + $0x8] sm:$0xff]
        %v242 = vld [vmem:[#allocation5 + $0x10] sm:$0xff]
        %v243 = vld [vmem:[#allocation5 + $0x18] sm:$0xff]
        %v244 = vld [vmem:[#allocation5 + $0x20] sm:$0xff]
        %v245 = vld [vmem:[#allocation5 + $0x28] sm:$0xff]
        %v246 = vld [vmem:[#allocation5 + $0x30] sm:$0xff]
        %v247 = vld [vmem:[#allocation5 + $0x38] sm:$0xff]
        %v248 = vld [vmem:[#allocation5 + $0x40] sm:$0xff]
        %v249 = vld [vmem:[#allocation5 + $0x48] sm:$0xff]
        %v250 = vld [vmem:[#allocation5 + $0x50] sm:$0xff]
        %v251 = vld [vmem:[#allocation5 + $0x58] sm:$0xff]
        %v252 = vld [vmem:[#allocation5 + $0x60] sm:$0xff]
        %v253 = vld [vmem:[#allocation5 + $0x68] sm:$0xff]
        %v254 = vld [vmem:[#allocation5 + $0x70] sm:$0xff]
        %v255 = vld [vmem:[#allocation5 + $0x78] sm:$0xff]
        %v256 = vld [vmem:[#allocation5 + $0x80] sm:$0xff]
        %v257 = vld [vmem:[#allocation5 + $0x88] sm:$0xff]
        %v258 = vld [vmem:[#allocation5 + $0x90] sm:$0xff]
        %v259 = vld [vmem:[#allocation5 + $0x98] sm:$0xff]
        %v260 = vld [vmem:[#allocation5 + $0xa0] sm:$0xff]
        %v261 = vld [vmem:[#allocation5 + $0xa8] sm:$0xff]
        %v262 = vld [vmem:[#allocation5 + $0xb0] sm:$0xff]
        %v263 = vld [vmem:[#allocation5 + $0xb8] sm:$0xff]
        %v264 = vld [vmem:[#allocation5 + $0xc0] sm:$0xff]
        %v265 = vld [vmem:[#allocation5 + $0xc8] sm:$0xff]
        %v266 = vld [vmem:[#allocation5 + $0xd0] sm:$0xff]
        %v267 = vld [vmem:[#allocation5 + $0xd8] sm:$0xff]
        %v268 = vld [vmem:[#allocation5 + $0xe0] sm:$0xff]
        %v269 = vld [vmem:[#allocation5 + $0xe8] sm:$0xff]
        %v270 = vld [vmem:[#allocation5 + $0xf0] sm:$0xff]
        %v271 = vld [vmem:[#allocation5 + $0xf8] sm:$0xff]
        %v272 = vld [vmem:[#allocation5 + $0x100] sm:$0xff]
        %v273 = vld [vmem:[#allocation5 + $0x108] sm:$0xff]
        %v274 = vld [vmem:[#allocation5 + $0x110] sm:$0xff]
        %v275 = vld [vmem:[#allocation5 + $0x118] sm:$0xff]
        %v276 = vld [vmem:[#allocation5 + $0x120] sm:$0xff]
        %v277 = vld [vmem:[#allocation5 + $0x128] sm:$0xff]
        %v278 = vld [vmem:[#allocation5 + $0x130] sm:$0xff]
        %v279 = vld [vmem:[#allocation5 + $0x138] sm:$0xff]
        %v280 = vld [vmem:[#allocation5 + $0x140] sm:$0xff]
        %v281 = vld [vmem:[#allocation5 + $0x148] sm:$0xff]
        %v282 = vld [vmem:[#allocation5 + $0x150] sm:$0xff]
        %v283 = vld [vmem:[#allocation5 + $0x158] sm:$0xff]
        %v284 = vld [vmem:[#allocation5 + $0x160] sm:$0xff]
        %v285 = vld [vmem:[#allocation5 + $0x168] sm:$0xff]
        %v286 = vld [vmem:[#allocation5 + $0x170] sm:$0xff]
        %v287 = vld [vmem:[#allocation5 + $0x178] sm:$0xff]
        %v288 = vld [vmem:[%s2] sm:$0x7]
        %v290 = vlaneseq
        %v291 = vshrl.u32 %v290, 7
        %v292 = vsub.s32 0, %v291
        %v293 = vrot.slane %v288, %v292
        %v294 = vlaneseq
        %v295 = vshrl.u32 %v294, 7
        %v296 = vsub.s32 1, %v295
        %v297 = vrot.slane %v288, %v296
        %v298 = vlaneseq
        %v299 = vshrl.u32 %v298, 7
        %v300 = vsub.s32 2, %v299
        %v301 = vrot.slane %v288, %v300
        %305 = vmatprep.subr.mxu0 %v241
        %306 = vmatpush1.msra.mxu0 %v240
        %307 = vmatprep.subr.mxu0 %v244
        %308 = vmatpush1.msra.mxu0 %v243
        %309 = vmatprep.subr.mxu0 %v247
        %310 = vmatpush1.msra.mxu0 %v246
        %311 = vmatprep.subr.mxu0 %v250
        %312 = vmatpush1.msra.mxu0 %v249
        %313 = vmatprep.subr.mxu0 %v253
        %314 = vmatpush1.msra.mxu0 %v252
        %315 = vmatprep.subr.mxu0 %v256
        %316 = vmatpush1.msra.mxu0 %v255
        %317 = vmatprep.subr.mxu0 %v259
        %318 = vmatpush1.msra.mxu0 %v258
        %319 = vmatprep.subr.mxu0 %v262
        %320 = vmatpush1.msra.mxu0 %v261
        %321 = vmatprep.subr.mxu0 %v265
        %322 = vmatpush1.msra.mxu0 %v264
        %323 = vmatprep.subr.mxu0 %v268
        %324 = vmatpush1.msra.mxu0 %v267
        %325 = vmatprep.subr.mxu0 %v271
        %326 = vmatpush1.msra.mxu0 %v270
        %327 = vmatprep.subr.mxu0 %v274
        %328 = vmatpush1.msra.mxu0 %v273
        %329 = vmatprep.subr.mxu0 %v277
        %330 = vmatpush1.msra.mxu0 %v276
        %331 = vmatprep.subr.mxu0 %v280
        %332 = vmatpush1.msra.mxu0 %v279
        %333 = vmatprep.subr.mxu0 %v283
        %334 = vmatpush1.msra.mxu0 %v282
        %335 = vmatprep.subr.mxu0 %v286
        %336 = vmatpush1.msra.mxu0 %v285
        %337 = vmatprep.subr.mxu0 0.0
        %338 = vmatpush1.msra.mxu0 0.0
        %339 = vmatprep.subr.mxu0 0.0
        %340 = vmatpush1.msra.mxu0 0.0
        %341 = vmatprep.subr.mxu0 0.0
        %342 = vmatpush1.msra.mxu0 0.0
        %343 = vmatprep.subr.mxu0 0.0
        %344 = vmatpush1.msra.mxu0 0.0
        %345 = vmatprep.subr.mxu0 0.0
        %346 = vmatpush1.msra.mxu0 0.0
        %347 = vmatprep.subr.mxu0 0.0
        %348 = vmatpush1.msra.mxu0 0.0
        %349 = vmatprep.subr.mxu0 0.0
        %350 = vmatpush1.msra.mxu0 0.0
        %351 = vmatprep.subr.mxu0 0.0
        %352 = vmatpush1.msra.mxu0 0.0
        %353 = vmatprep.subr.mxu0 0.0
        %354 = vmatpush1.msra.mxu0 0.0
        %355 = vmatprep.subr.mxu0 0.0
        %356 = vmatpush1.msra.mxu0 0.0
        %357 = vmatprep.subr.mxu0 0.0
        %358 = vmatpush1.msra.mxu0 0.0
        %359 = vmatprep.subr.mxu0 0.0
        %360 = vmatpush1.msra.mxu0 0.0
        %361 = vmatprep.subr.mxu0 0.0
        %362 = vmatpush1.msra.mxu0 0.0
        %363 = vmatprep.subr.mxu0 0.0
        %364 = vmatpush1.msra.mxu0 0.0
        %365 = vmatprep.subr.mxu0 0.0
        %366 = vmatpush1.msra.mxu0 0.0
        %367 = vmatprep.subr.mxu0 0.0
        %368 = vmatpush1.msra.mxu0 0.0
        %369 = vmatprep.mubr.f32.mxu0 0.0
        %370 = vmatmul.mubr.f32.gmra.mrb[0].mxu0 %v224
        %v371 = vpop.f32.mrb[0].mxu0
        %v372 = vadd.f32 %v293, %v371
        %v373 = vpop.f32.mrb[0].mxu0
        %v374 = vadd.f32 %v297, %v373
        %375 = vmatprep.mubr.f32.mxu0 0.0
        %376 = vmatmul.mubr.f32.gmra.mrb[0].mxu0 %v225
        %v377 = vpop.f32.mrb[0].mxu0
        %v378 = vadd.f32 %v293, %v377
        %v379 = vpop.f32.mrb[0].mxu0
        %v380 = vadd.f32 %v297, %v379
        %381 = vmatprep.mubr.f32.mxu0 0.0
        %382 = vmatmul.mubr.f32.gmra.mrb[0].mxu0 %v226
        %v383 = vpop.f32.mrb[0].mxu0
        %v384 = vadd.f32 %v293, %v383
        %v385 = vpop.f32.mrb[0].mxu0
        %v386 = vadd.f32 %v297, %v385
        %387 = vmatprep.mubr.f32.mxu0 0.0
        %388 = vmatmul.mubr.f32.gmra.mrb[0].mxu0 %v227
        %v389 = vpop.f32.mrb[0].mxu0
        %v390 = vadd.f32 %v293, %v389
        %v391 = vpop.f32.mrb[0].mxu0
        %v392 = vadd.f32 %v297, %v391
        %393 = vmatprep.mubr.f32.mxu0 0.0
        %394 = vmatmul.mubr.f32.gmra.mrb[0].mxu0 %v228
        %v395 = vpop.f32.mrb[0].mxu0
        %v396 = vadd.f32 %v293, %v395
        %v397 = vpop.f32.mrb[0].mxu0
        %v398 = vadd.f32 %v297, %v397
        %399 = vmatprep.mubr.f32.mxu0 0.0
        %400 = vmatmul.mubr.f32.gmra.mrb[0].mxu0 %v229
        %v401 = vpop.f32.mrb[0].mxu0
        %v402 = vadd.f32 %v293, %v401
        %v403 = vpop.f32.mrb[0].mxu0
        %v404 = vadd.f32 %v297, %v403
        %405 = vmatprep.mubr.f32.mxu0 0.0
        %406 = vmatmul.mubr.f32.gmra.mrb[0].mxu0 %v230
        %v407 = vpop.f32.mrb[0].mxu0
        %v408 = vadd.f32 %v293, %v407
        %v409 = vpop.f32.mrb[0].mxu0
        %v410 = vadd.f32 %v297, %v409
        %411 = vmatprep.mubr.f32.mxu0 0.0
        %412 = vmatmul.mubr.f32.gmra.mrb[0].mxu0 %v231
        %v413 = vpop.f32.mrb[0].mxu0
        %v414 = vadd.f32 %v293, %v413
        %v415 = vpop.f32.mrb[0].mxu0
        %v416 = vadd.f32 %v297, %v415
        %417 = vmatprep.mubr.f32.mxu0 0.0
        %418 = vmatmul.mubr.f32.gmra.mrb[0].mxu0 %v232
        %v419 = vpop.f32.mrb[0].mxu0
        %v420 = vadd.f32 %v293, %v419
        %v421 = vpop.f32.mrb[0].mxu0
        %v422 = vadd.f32 %v297, %v421
        %423 = vmatprep.mubr.f32.mxu0 0.0
        %424 = vmatmul.mubr.f32.gmra.mrb[0].mxu0 %v233
        %v425 = vpop.f32.mrb[0].mxu0
        %v426 = vadd.f32 %v293, %v425
        %v427 = vpop.f32.mrb[0].mxu0
        %v428 = vadd.f32 %v297, %v427
        %429 = vmatprep.mubr.f32.mxu0 0.0
        %430 = vmatmul.mubr.f32.gmra.mrb[0].mxu0 %v234
        %v431 = vpop.f32.mrb[0].mxu0
        %v432 = vadd.f32 %v293, %v431
        %v433 = vpop.f32.mrb[0].mxu0
        %v434 = vadd.f32 %v297, %v433
        %435 = vmatprep.mubr.f32.mxu0 0.0
        %436 = vmatmul.mubr.f32.gmra.mrb[0].mxu0 %v235
        %v437 = vpop.f32.mrb[0].mxu0
        %v438 = vadd.f32 %v293, %v437
        %v439 = vpop.f32.mrb[0].mxu0
        %v440 = vadd.f32 %v297, %v439
        %441 = vmatprep.mubr.f32.mxu0 0.0
        %442 = vmatmul.mubr.f32.gmra.mrb[0].mxu0 %v236
        %v443 = vpop.f32.mrb[0].mxu0
        %v444 = vadd.f32 %v293, %v443
        %v445 = vpop.f32.mrb[0].mxu0
        %v446 = vadd.f32 %v297, %v445
        %447 = vmatprep.mubr.f32.mxu0 0.0
        %448 = vmatmul.mubr.f32.gmra.mrb[0].mxu0 %v237
        %v449 = vpop.f32.mrb[0].mxu0
        %v450 = vadd.f32 %v293, %v449
        %v451 = vpop.f32.mrb[0].mxu0
        %v452 = vadd.f32 %v297, %v451
        %453 = vmatprep.mubr.f32.mxu0 0.0
        %454 = vmatmul.mubr.f32.gmra.mrb[0].mxu0 %v238
        %v455 = vpop.f32.mrb[0].mxu0
        %v456 = vadd.f32 %v293, %v455
        %v457 = vpop.f32.mrb[0].mxu0
        %v458 = vadd.f32 %v297, %v457
        %459 = vmatprep.mubr.f32.mxu0 0.0
        %460 = vmatmul.mubr.f32.gmra.mrb[0].mxu0 %v239
        %v461 = vpop.f32.mrb[0].mxu0
        %v462 = vadd.f32 %v293, %v461
        %v463 = vpop.f32.mrb[0].mxu0
        %v464 = vadd.f32 %v297, %v463
        %465 = vdwg.mxu0
        %466 = vmatprep.subr.mxu0 0.0
        %467 = vmatpush1.msra.mxu0 %v242
        %468 = vmatprep.subr.mxu0 0.0
        %469 = vmatpush1.msra.mxu0 %v245
        %470 = vmatprep.subr.mxu0 0.0
        %471 = vmatpush1.msra.mxu0 %v248
        %472 = vmatprep.subr.mxu0 0.0
        %473 = vmatpush1.msra.mxu0 %v251
        %474 = vmatprep.subr.mxu0 0.0
        %475 = vmatpush1.msra.mxu0 %v254
        %476 = vmatprep.subr.mxu0 0.0
        %477 = vmatpush1.msra.mxu0 %v257
        %478 = vmatprep.subr.mxu0 0.0
        %479 = vmatpush1.msra.mxu0 %v260
        %480 = vmatprep.subr.mxu0 0.0
        %481 = vmatpush1.msra.mxu0 %v263
        %482 = vmatprep.subr.mxu0 0.0
        %483 = vmatpush1.msra.mxu0 %v266
        %484 = vmatprep.subr.mxu0 0.0
        %485 = vmatpush1.msra.mxu0 %v269
        %486 = vmatprep.subr.mxu0 0.0
        %487 = vmatpush1.msra.mxu0 %v272
        %488 = vmatprep.subr.mxu0 0.0
        %489 = vmatpush1.msra.mxu0 %v275
        %490 = vmatprep.subr.mxu0 0.0
        %491 = vmatpush1.msra.mxu0 %v278
        %492 = vmatprep.subr.mxu0 0.0
        %493 = vmatpush1.msra.mxu0 %v281
        %494 = vmatprep.subr.mxu0 0.0
        %495 = vmatpush1.msra.mxu0 %v284
        %496 = vmatprep.subr.mxu0 0.0
        %497 = vmatpush1.msra.mxu0 %v287
        %498 = vmatprep.subr.mxu0 0.0
        %499 = vmatpush1.msra.mxu0 0.0
        %500 = vmatprep.subr.mxu0 0.0
        %501 = vmatpush1.msra.mxu0 0.0
        %502 = vmatprep.subr.mxu0 0.0
        %503 = vmatpush1.msra.mxu0 0.0
        %504 = vmatprep.subr.mxu0 0.0
        %505 = vmatpush1.msra.mxu0 0.0
        %506 = vmatprep.subr.mxu0 0.0
        %507 = vmatpush1.msra.mxu0 0.0
        %508 = vmatprep.subr.mxu0 0.0
        %509 = vmatpush1.msra.mxu0 0.0
        %510 = vmatprep.subr.mxu0 0.0
        %511 = vmatpush1.msra.mxu0 0.0
        %512 = vmatprep.subr.mxu0 0.0
        %513 = vmatpush1.msra.mxu0 0.0
        %514 = vmatprep.subr.mxu0 0.0
        %515 = vmatpush1.msra.mxu0 0.0
        %516 = vmatprep.subr.mxu0 0.0
        %517 = vmatpush1.msra.mxu0 0.0
        %518 = vmatprep.subr.mxu0 0.0
        %519 = vmatpush1.msra.mxu0 0.0
        %520 = vmatprep.subr.mxu0 0.0
        %521 = vmatpush1.msra.mxu0 0.0
        %522 = vmatprep.subr.mxu0 0.0
        %523 = vmatpush1.msra.mxu0 0.0
        %524 = vmatprep.subr.mxu0 0.0
        %525 = vmatpush1.msra.mxu0 0.0
        %526 = vmatprep.subr.mxu0 0.0
        %527 = vmatpush1.msra.mxu0 0.0
        %528 = vmatprep.subr.mxu0 0.0
        %529 = vmatpush1.msra.mxu0 0.0
        %530 = vmatprep.mubr.f32.mxu0 0.0
        %531 = vmatmul.mubr.f32.gmra.mrb[0].mxu0 %v224
        %v532 = vpop.f32.mrb[0].mxu0
        %v533 = vadd.f32 %v301, %v532
        %v534 = vpop.f32.mrb[0].mxu0
        %535 = vmatprep.mubr.f32.mxu0 0.0
        %536 = vmatmul.mubr.f32.gmra.mrb[0].mxu0 %v225
        %v537 = vpop.f32.mrb[0].mxu0
        %v538 = vadd.f32 %v301, %v537
        %v539 = vpop.f32.mrb[0].mxu0
        %540 = vmatprep.mubr.f32.mxu0 0.0
        %541 = vmatmul.mubr.f32.gmra.mrb[0].mxu0 %v226
        %v542 = vpop.f32.mrb[0].mxu0
        %v543 = vadd.f32 %v301, %v542
        %v544 = vpop.f32.mrb[0].mxu0
        %545 = vmatprep.mubr.f32.mxu0 0.0
        %546 = vmatmul.mubr.f32.gmra.mrb[0].mxu0 %v227
        %v547 = vpop.f32.mrb[0].mxu0
        %v548 = vadd.f32 %v301, %v547
        %v549 = vpop.f32.mrb[0].mxu0
        %550 = vmatprep.mubr.f32.mxu0 0.0
        %551 = vmatmul.mubr.f32.gmra.mrb[0].mxu0 %v228
        %v552 = vpop.f32.mrb[0].mxu0
        %v553 = vadd.f32 %v301, %v552
        %v554 = vpop.f32.mrb[0].mxu0
        %555 = vmatprep.mubr.f32.mxu0 0.0
        %556 = vmatmul.mubr.f32.gmra.mrb[0].mxu0 %v229
        %v557 = vpop.f32.mrb[0].mxu0
        %v558 = vadd.f32 %v301, %v557
        %v559 = vpop.f32.mrb[0].mxu0
        %560 = vmatprep.mubr.f32.mxu0 0.0
        %561 = vmatmul.mubr.f32.gmra.mrb[0].mxu0 %v230
        %v562 = vpop.f32.mrb[0].mxu0
        %v563 = vadd.f32 %v301, %v562
        %v564 = vpop.f32.mrb[0].mxu0
        %565 = vmatprep.mubr.f32.mxu0 0.0
        %566 = vmatmul.mubr.f32.gmra.mrb[0].mxu0 %v231
        %v567 = vpop.f32.mrb[0].mxu0
        %v568 = vadd.f32 %v301, %v567
        %v569 = vpop.f32.mrb[0].mxu0
        %570 = vmatprep.mubr.f32.mxu0 0.0
        %571 = vmatmul.mubr.f32.gmra.mrb[0].mxu0 %v232
        %v572 = vpop.f32.mrb[0].mxu0
        %v573 = vadd.f32 %v301, %v572
        %v574 = vpop.f32.mrb[0].mxu0
        %575 = vmatprep.mubr.f32.mxu0 0.0
        %576 = vmatmul.mubr.f32.gmra.mrb[0].mxu0 %v233
        %v577 = vpop.f32.mrb[0].mxu0
        %v578 = vadd.f32 %v301, %v577
        %v579 = vpop.f32.mrb[0].mxu0
        %580 = vmatprep.mubr.f32.mxu0 0.0
        %581 = vmatmul.mubr.f32.gmra.mrb[0].mxu0 %v234
        %v582 = vpop.f32.mrb[0].mxu0
        %v583 = vadd.f32 %v301, %v582
        %v584 = vpop.f32.mrb[0].mxu0
        %585 = vmatprep.mubr.f32.mxu0 0.0
        %586 = vmatmul.mubr.f32.gmra.mrb[0].mxu0 %v235
        %v587 = vpop.f32.mrb[0].mxu0
        %v588 = vadd.f32 %v301, %v587
        %v589 = vpop.f32.mrb[0].mxu0
        %590 = vmatprep.mubr.f32.mxu0 0.0
        %591 = vmatmul.mubr.f32.gmra.mrb[0].mxu0 %v236
        %v592 = vpop.f32.mrb[0].mxu0
        %v593 = vadd.f32 %v301, %v592
        %v594 = vpop.f32.mrb[0].mxu0
        %595 = vmatprep.mubr.f32.mxu0 0.0
        %596 = vmatmul.mubr.f32.gmra.mrb[0].mxu0 %v237
        %v597 = vpop.f32.mrb[0].mxu0
        %v598 = vadd.f32 %v301, %v597
        %v599 = vpop.f32.mrb[0].mxu0
        %600 = vmatprep.mubr.f32.mxu0 0.0
        %601 = vmatmul.mubr.f32.gmra.mrb[0].mxu0 %v238
        %v602 = vpop.f32.mrb[0].mxu0
        %v603 = vadd.f32 %v301, %v602
        %v604 = vpop.f32.mrb[0].mxu0
        %605 = vmatprep.mubr.f32.mxu0 0.0
        %606 = vmatmul.mubr.f32.gmra.mrb[0].mxu0 %v239
        %v607 = vpop.f32.mrb[0].mxu0
        %v608 = vadd.f32 %v301, %v607
        %v609 = vpop.f32.mrb[0].mxu0
        %610 = vdwg.mxu0
        %611 = vst [vmem:[%s221] sm:$0xff] %v372
        %612 = vst [vmem:[%s221 + $0x8] sm:$0xff] %v374
        %613 = vst [vmem:[%s221 + $0x10] sm:$0xff] %v533
        %614 = vst [vmem:[%s221 + $0x18] sm:$0xff] %v378
        %615 = vst [vmem:[%s221 + $0x20] sm:$0xff] %v380
        %616 = vst [vmem:[%s221 + $0x28] sm:$0xff] %v538
        %617 = vst [vmem:[%s221 + $0x30] sm:$0xff] %v384
        %618 = vst [vmem:[%s221 + $0x38] sm:$0xff] %v386
        %619 = vst [vmem:[%s221 + $0x40] sm:$0xff] %v543
        %620 = vst [vmem:[%s221 + $0x48] sm:$0xff] %v390
        %621 = vst [vmem:[%s221 + $0x50] sm:$0xff] %v392
        %622 = vst [vmem:[%s221 + $0x58] sm:$0xff] %v548
        %623 = vst [vmem:[%s221 + $0x60] sm:$0xff] %v396
        %624 = vst [vmem:[%s221 + $0x68] sm:$0xff] %v398
        %625 = vst [vmem:[%s221 + $0x70] sm:$0xff] %v553
        %626 = vst [vmem:[%s221 + $0x78] sm:$0xff] %v402
        %627 = vst [vmem:[%s221 + $0x80] sm:$0xff] %v404
        %628 = vst [vmem:[%s221 + $0x88] sm:$0xff] %v558
        %629 = vst [vmem:[%s221 + $0x90] sm:$0xff] %v408
        %630 = vst [vmem:[%s221 + $0x98] sm:$0xff] %v410
        %631 = vst [vmem:[%s221 + $0xa0] sm:$0xff] %v563
        %632 = vst [vmem:[%s221 + $0xa8] sm:$0xff] %v414
        %633 = vst [vmem:[%s221 + $0xb0] sm:$0xff] %v416
        %634 = vst [vmem:[%s221 + $0xb8] sm:$0xff] %v568
        %635 = vst [vmem:[%s221 + $0xc0] sm:$0xff] %v420
        %636 = vst [vmem:[%s221 + $0xc8] sm:$0xff] %v422
        %637 = vst [vmem:[%s221 + $0xd0] sm:$0xff] %v573
        %638 = vst [vmem:[%s221 + $0xd8] sm:$0xff] %v426
        %639 = vst [vmem:[%s221 + $0xe0] sm:$0xff] %v428
        %640 = vst [vmem:[%s221 + $0xe8] sm:$0xff] %v578
        %641 = vst [vmem:[%s221 + $0xf0] sm:$0xff] %v432
        %642 = vst [vmem:[%s221 + $0xf8] sm:$0xff] %v434
        %643 = vst [vmem:[%s221 + $0x100] sm:$0xff] %v583
        %644 = vst [vmem:[%s221 + $0x108] sm:$0xff] %v438
        %645 = vst [vmem:[%s221 + $0x110] sm:$0xff] %v440
        %646 = vst [vmem:[%s221 + $0x118] sm:$0xff] %v588
        %647 = vst [vmem:[%s221 + $0x120] sm:$0xff] %v444
        %648 = vst [vmem:[%s221 + $0x128] sm:$0xff] %v446
        %649 = vst [vmem:[%s221 + $0x130] sm:$0xff] %v593
        %650 = vst [vmem:[%s221 + $0x138] sm:$0xff] %v450
        %651 = vst [vmem:[%s221 + $0x140] sm:$0xff] %v452
        %652 = vst [vmem:[%s221 + $0x148] sm:$0xff] %v598
        %653 = vst [vmem:[%s221 + $0x150] sm:$0xff] %v456
        %654 = vst [vmem:[%s221 + $0x158] sm:$0xff] %v458
        %655 = vst [vmem:[%s221 + $0x160] sm:$0xff] %v603
        %656 = vst [vmem:[%s221 + $0x168] sm:$0xff] %v462
        %657 = vst [vmem:[%s221 + $0x170] sm:$0xff] %v464
        %658 = vst [vmem:[%s221 + $0x178] sm:$0xff] %v608
        %s659 = sand.u32 %s113, 1
        %s660 = scalar_lea.sflag [#allocation4], %s659
        %s661 = sand.u32 %s113, 1
        %s662 = smul.addr %s661, 384
        %s663 = scalar_lea.vmem [#allocation7], %s662
        // Predicated region
        $region41: #{tpu_custom_call.1} parent=31 // pred_check
          %p664 = pneg %p123
        $region42: #{tpu_custom_call.1} parent=31 // pred_check_branch
          %666 = sbr.rel (%p664) target = $region44
        $region43: #{tpu_custom_call.1} parent=31 // pred_region
          %s667 = smul.u32 16, %s26
          %s669 = ssub.s32 6144, 6144
          %670 = vsyncadd %s660, %s669
          %s671 = smul.addr %s667, 3
          %s672 = smul.addr %s25, 96
          %s673 = sadd.s32 %s671, %s672
          %s674 = smul.addr %s673, 128
          %s675 = scalar_lea.hbm %s3, %s674
          %s676 = sshll.u32 %s663, 4
          %s677 = int_to_ptr.vmem [resolvable:$true] %s676
          %682 = dma.vmem_to_hbm [thread:$0]  %s677, 6144, %s675, %s660, 384, 384, 24
        $region44: #{tpu_custom_call.1} parent=31 // pred_fallthru
          _
      $region32: #{tpu_custom_call.1} parent=5 // pred_fallthru
        _
      %p683 = scmp.le.s32.totalorder 2, %s16
      // Predicated region
      $region45: #{tpu_custom_call.1} parent=5 // pred_check
        %p684 = pneg %p683
      $region46: #{tpu_custom_call.1} parent=5 // pred_check_branch
        %686 = sbr.rel (%p684) target = $region48
      $region47: #{tpu_custom_call.1} parent=5 // pred_region
        %s687 = ssub.s32 %s16, 2
        // Predicated region
        $region49: #{tpu_custom_call.1} parent=47 // pred_check
          %p688 = pneg %p129
        $region50: #{tpu_custom_call.1} parent=47 // pred_check_branch
          %690 = sbr.rel (%p688) target = $region52
        $region51: #{tpu_custom_call.1} parent=47 // pred_region
          %s691 = sand.u32 %s114, 1
          %s692 = scalar_lea.sflag [#allocation4], %s691
          %s693 = sand.u32 %s114, 1
          %s694 = smul.addr %s693, 384
          %s695 = scalar_lea.vmem [#allocation7], %s694
          %696 = dma.done %s692, 6144
        $region52: #{tpu_custom_call.1} parent=47 // pred_fallthru
          _
      $region48: #{tpu_custom_call.1} parent=5 // pred_fallthru
        _
    $region6: #{tpu_custom_call.1} parent=1 // loop_footer
      %s20 = sadd.s32 1, %s16
    $region7: #{tpu_custom_call.1} parent=1 // loop_footer_branch
      %15 = sbr.rel target = $region3
    $region8: #{tpu_custom_call.1} parent=1 // loop_exit
      _
    %697 = vsyncpa [#allocation3], 1
    %s698 = scalar_lea.sflag [#allocation3], 1
    %699 = vsyncpa %s698, 1
    %700 = vsyncpa [#allocation6], 1
    %701 = vsyncpa [#allocation4], 1
    %s702 = scalar_lea.sflag [#allocation4], 1
    %703 = vsyncpa %s702, 1

</llo_original>
